<compile_context>
chip_gen: v7x
topology: tpu7x:2x2x1
jax: 0.10.0
libtpu: 0.0.40
codegen_flags: <defaults>
</compile_context>

<pallas_src>
import jax
import jax.numpy as jnp
from jax.experimental import pallas as pl
from jax.experimental.pallas import tpu as pltpu


_LANES = 128
# Double-buffered (input + output) working-set target; safe on all generations
# once the scoped VMEM limit is raised to 32 MiB.
_VMEM_BUDGET_BYTES = 16 * 1024 * 1024
_VMEM_LIMIT_BYTES = 32 * 1024 * 1024


def _round_up(x: int, m: int) -> int:
    return (x + m - 1) // m * m


def _choose_tm(rows: int, in_row_bytes: int, out_row_bytes: int) -> int:
    """Row-tile size from a VMEM byte budget (counting VMEM lane padding)."""
    per_row = in_row_bytes + out_row_bytes
    tm = _VMEM_BUDGET_BYTES // (2 * per_row)          # 2x: double buffering
    tm = max(8, (tm // 8) * 8)
    # v7x megacore: keep >= 2 tiles on the "parallel" axis when there is a
    # non-trivial amount of work so both TensorCores get a share.
    if rows > 4096:
        tm = min(tm, _round_up(-(-rows // 2), 8))
    return min(tm, _round_up(rows, 8))


def _float_embedding_lane_dense_kernel(tok_ref, out_ref):
    """tok_ref: (TM, G) f32; out_ref: (TM, 128) f32, with G = 128 // E."""
    g = tok_ref.shape[-1]
    lanes = out_ref.shape[-1]          # 128
    e = lanes // g                     # embedding_dim

    val = tok_ref[...]                                            # (TM, G)
    # try: vec[0] = float(token)  /  except: vec[0] = -999.0
    val = jnp.where(jnp.isnan(val), jnp.float32(-999.0), val)

    if g == lanes:                     # E == 1: output is just the values.
        out_ref[...] = val
        return

    # Scatter matrix: S[gi, l] = 1.0 iff l == gi * E.  Token gi of a row lands
    # at lane gi*E; all other lanes stay zero.  Runs on the otherwise-idle MXU.
    gi = jax.lax.broadcasted_iota(jnp.int32, (g, lanes), 0)
    li = jax.lax.broadcasted_iota(jnp.int32, (g, lanes), 1)
    scatter = (li == gi * e).astype(jnp.float32)                  # (G, 128)

    # HIGHEST precision keeps f32 token values exact through the MXU (default
    # single-pass bf16 would round them to ~8 mantissa bits, -999 -> -1000).
    out_ref[...] = jnp.dot(val, scatter,
                           precision=jax.lax.Precision.HIGHEST,
                           preferred_element_type=jnp.float32)


def _float_embedding_rowwise_kernel(tok_ref, out_ref):
    """Fallback path: tok_ref (TM, 1) f32; out_ref (TM, E) f32."""
    val = tok_ref[...]                                            # (TM, 1)
    val = jnp.where(jnp.isnan(val), jnp.float32(-999.0), val)
    lane = jax.lax.broadcasted_iota(jnp.int32, (1, out_ref.shape[-1]), 1)
    out_ref[...] = jnp.where(lane == 0, val, jnp.float32(0.0))    # (TM, E)


def float_embedding(tokens: jax.Array, embedding_dim: int, *, tm=None) -> jax.Array:
    """tokens: (B, S) float32 (NaN == unparseable) -> (B, S, embedding_dim)."""
    B, S = tokens.shape
    E = int(embedding_dim)
    N = B * S
    tok = tokens.astype(jnp.float32).reshape(-1)                  # (N,)

    if 1 <= E <= _LANES and _LANES % E == 0:
        # Lane-dense path: pack G = 128 // E tokens per 128-lane output row.
        G = _LANES // E
        N_pad = _round_up(N, G)
        if N_pad != N:
            # TODO(synk): when B*S is not a multiple of 128//E the trailing
            # [:N] trim below materializes one output copy; common shapes
            # (N % G == 0) take the copy-free path.
            tok = jnp.pad(tok, (0, N_pad - N))                    # pads with 0.0
        R = N_pad // G
        # The (TM, G) token block is lane-padded to (TM, 128) in VMEM, so it
        # costs as much VMEM per row as the output tile — budget for both.
        TM = tm if tm is not None else _choose_tm(R, _LANES * 4, _LANES * 4)
        tok2 = tok.reshape(R, G)

        out2 = pl.pallas_call(
            _float_embedding_lane_dense_kernel,
            out_shape=jax.ShapeDtypeStruct((R, _LANES), jnp.float32),
            grid=(pl.cdiv(R, TM),),
            in_specs=[pl.BlockSpec((TM, G), lambda i: (i, 0))],
            out_specs=pl.BlockSpec((TM, _LANES), lambda i: (i, 0)),
            compiler_params=pltpu.CompilerParams(
                dimension_semantics=("parallel",),
                vmem_limit_bytes=_VMEM_LIMIT_BYTES),
        )(tok2)

        out = out2.reshape(N_pad, E)          # free bitcast (row-major match)
        if N_pad != N:
            out = out[:N]
        return out.reshape(B, S, E)

    # Fallback for embedding dims that do not divide 128 (or exceed it): keep
    # the full E as the last block dim (legal since it equals the array dim;
    # stores are partially masked, but this path is only for unusual E).
    TM = tm if tm is not None else _choose_tm(
        N, _LANES * 4, _round_up(E, _LANES) * 4)
    tok2 = tok.reshape(N, 1)
    out = pl.pallas_call(
        _float_embedding_rowwise_kernel,
        out_shape=jax.ShapeDtypeStruct((N, E), jnp.float32),
        grid=(pl.cdiv(N, TM),),
        in_specs=[pl.BlockSpec((TM, 1), lambda i: (i, 0))],
        out_specs=pl.BlockSpec((TM, E), lambda i: (i, 0)),
        compiler_params=pltpu.CompilerParams(
            dimension_semantics=("parallel",),
            vmem_limit_bytes=_VMEM_LIMIT_BYTES),
    )(tok2)
    return out.reshape(B, S, E)


def float_embedding_ref(tokens: jax.Array, embedding_dim: int) -> jax.Array:
    """Pure-JAX reference matching the PyTorch forward."""
    val = jnp.where(jnp.isnan(tokens), -999.0, tokens).astype(jnp.float32)
    out = jnp.zeros(tokens.shape + (embedding_dim,), dtype=jnp.float32)
    return out.at[..., 0].set(val)


if __name__ == "__main__":
    # FloatEmbedding has no learned parameters — only embedding_dim.
    B, S, E = 2, 8, 32
    key = jax.random.PRNGKey(0)
    tokens = jax.random.normal(key, (B, S), dtype=jnp.float32) * 10.0
    # Mark a couple of tokens as "unparseable" (NaN -> -999.0 branch).
    tokens = tokens.at[0, 3].set(jnp.nan)
    tokens = tokens.at[1, 7].set(jnp.nan)

    out = jax.block_until_ready(float_embedding(tokens, E))
    ref = float_embedding_ref(tokens, E)
    assert out.shape == (B, S, E), out.shape
    assert out.dtype == jnp.float32, out.dtype
    assert jnp.allclose(out, ref), "lane-dense path mismatch vs reference"

    # Multi-tile grid with a masked partial last tile (forced small TM).
    B2, S2, E2 = 2, 40, 16
    tokens2 = jax.random.normal(jax.random.PRNGKey(0), (B2, S2),
                                dtype=jnp.float32) * 5.0
    tokens2 = tokens2.at[1, 13].set(jnp.nan)
    out2 = jax.block_until_ready(float_embedding(tokens2, E2, tm=8))
    assert jnp.allclose(out2, float_embedding_ref(tokens2, E2)), \
        "multi-tile / masked-last-tile mismatch vs reference"

    # Pad + trim path (B*S not a multiple of 128 // E).
    B3, S3, E3 = 3, 5, 64
    tokens3 = jax.random.normal(jax.random.PRNGKey(0), (B3, S3),
                                dtype=jnp.float32)
    out3 = jax.block_until_ready(float_embedding(tokens3, E3))
    assert jnp.allclose(out3, float_embedding_ref(tokens3, E3)), \
        "pad/trim path mismatch vs reference"

    # Also exercise the fallback path (embedding_dim not dividing 128).
    E4 = 48
    out4 = jax.block_until_ready(float_embedding(tokens, E4))
    assert out4.shape == (B, S, E4), out4.shape
    assert jnp.allclose(out4, float_embedding_ref(tokens, E4)), \
        "fallback path mismatch vs reference"

    print("KERNEL_OK")
</pallas_src>

<mosaic_0001>
module attributes {stable_mosaic.version = 11 : i64} {
  func.func @_float_embedding_lane_dense_kernel(%arg0: i32, %arg1: memref<8x4xf32, #tpu.memory_space<vmem>>, %arg2: memref<8x128xf32, #tpu.memory_space<vmem>>) attributes {dimension_semantics = [#tpu.dimension_semantics<parallel>], iteration_bounds = array<i64: 1>, scalar_prefetch = 0 : i64, scratch_operands = 0 : i64, tpu.core_type = #tpu.core_type<tc>, window_params = [{transform_indices = @transform_0, window_bounds = array<i64: 8, 4>}, {transform_indices = @transform_1, window_bounds = array<i64: 8, 128>}]} {
    %c0 = arith.constant 0 : index
    %c0_0 = arith.constant 0 : index
    %0 = vector.load %arg1[%c0, %c0_0] : memref<8x4xf32, #tpu.memory_space<vmem>>, vector<8x4xf32>
    %1 = arith.cmpf one, %0, %0 : vector<8x4xf32>
    %cst = arith.constant -9.990000e+02 : f32
    %2 = vector.broadcast %cst : f32 to vector<8x4xf32>
    %3 = arith.select %1, %2, %0 : vector<8x4xi1>, vector<8x4xf32>
    %4 = tpu.iota {dimensions = array<i32: 0>} : vector<4x128xi32>
    %5 = tpu.iota {dimensions = array<i32: 1>} : vector<4x128xi32>
    %c32_i32 = arith.constant 32 : i32
    %6 = vector.broadcast %c32_i32 : i32 to vector<4x128xi32>
    %7 = arith.muli %4, %6 : vector<4x128xi32>
    %8 = arith.cmpi eq, %5, %7 : vector<4x128xi32>
    %9 = arith.extui %8 : vector<4x128xi1> to vector<4x128xi32>
    %10 = arith.sitofp %9 : vector<4x128xi32> to vector<4x128xf32>
    %cst_1 = arith.constant dense<0.000000e+00> : vector<8x128xf32>
    %11 = tpu.matmul %3, %10, %cst_1 {dimension_numbers = #tpu.dot_dimension_numbers<[1], [0], [0], [1], [0, 0, 1, 1], [], []>, precision = #tpu.contract_precision<fp32>} : vector<8x4xf32>, vector<4x128xf32>, vector<8x128xf32> -> vector<8x128xf32>
    %c0_2 = arith.constant 0 : index
    %c0_3 = arith.constant 0 : index
    %12 = vector.load %arg2[%c0_2, %c0_3] : memref<8x128xf32, #tpu.memory_space<vmem>>, vector<8x128xf32>
    tpu.vector_store %arg2[%c0_2, %c0_3], %11 {strides = array<i32>} : memref<8x128xf32, #tpu.memory_space<vmem>>, vector<8x128xf32>,
    return
  }
  func.func @transform_0(%arg0: i32) -> (i32, i32) {
    %c0_i32 = arith.constant 0 : i32
    %c0_i32_0 = arith.constant 0 : i32
    return %arg0, %c0_i32 : i32, i32
  }
  func.func @transform_1(%arg0: i32) -> (i32, i32) {
    %c0_i32 = arith.constant 0 : i32
    %c0_i32_0 = arith.constant 0 : i32
    return %arg0, %c0_i32 : i32, i32
  }
}

</mosaic_0001>

<llo_original>
// kernel: tpu_custom_call.1
$region0: #{tpu_custom_call.1}
  #allocation0 [shape = 'u32[]', space=smem, size = 0x4, offset = 0x4, fixed_abs, tag = 'smem constant byte address 0x4 - core index']
  #allocation1 [shape = 'u32[144,128]{1,0:T(1,128)}', space=vmem, size = 0x12000, scoped, tag = 'internal scratch']
  %s0 = inlined_call_operand.hbm [shape: f32[4,4], index: 0, kind: input, shape index: {}]
  %s1 = inlined_call_operand.hbm [shape: f32[4,128], index: 1, kind: output, shape index: {}]
  %s2 = sld [smem:[#allocation0]]
  $region18: #{tpu_custom_call.1} parent=0
    _
  %s4 = ssub.s32 1, %s2
  %s5 = scalar_select 0, %s4, %s2
  $region1: #{tpu_custom_call.1} parent=0
    #allocation2 [shape = 'u8[4096]{0}', space=vmem, size = 0x1000, scoped, tag = 'input window, operand 0, single buffered']
    #allocation3 [shape = 's32[1]{0}', space=sflag, size = 0x4, scoped, tag = 'scoped memory for tpu_custom_call.1']
    #allocation4 [shape = 's32[1]{0}', space=sflag, size = 0x4, scoped, tag = 'scoped memory for tpu_custom_call.1']
    #allocation5 [shape = 'u8[4096]{0}', space=vmem, size = 0x1000, scoped, tag = 'output window, operand 0, single buffered']
    %6 = vsyncpa [#allocation3], 0
    %7 = vsyncpa [#allocation4], 0
    // Predicated region
    $region2: #{tpu_custom_call.1} parent=1 // pred_check
      _
    $region3: #{tpu_custom_call.1} parent=1 // pred_check_branch
      %9 = sbr.rel (0) target = $region5
    $region4: #{tpu_custom_call.1} parent=1 // pred_region
      %s11 = ssub.s32 128, 64
      %12 = vsyncadd [#allocation3], %s11
      %s13 = sshll.u32 [#allocation2], 4
      %s14 = int_to_ptr.vmem [resolvable:$true] %s13
      %19 = dma.hbm_to_vmem [thread:$0]  %s0, 64, %s14, [#allocation3], 64, 64, 4
    $region5: #{tpu_custom_call.1} parent=1 // pred_fallthru
      _
    // Predicated region
    $region6: #{tpu_custom_call.1} parent=1 // pred_check
      _
    $region7: #{tpu_custom_call.1} parent=1 // pred_check_branch
      %21 = sbr.rel (0) target = $region9
    $region8: #{tpu_custom_call.1} parent=1 // pred_region
      %22 = dma.done [#allocation3], 128
    $region9: #{tpu_custom_call.1} parent=1 // pred_fallthru
      _
    %v23 = vld [vmem:[#allocation2] sm:$0xff]
    %vm24 = vcmp.ne.f32.partialorder %v23, %v23
    %v25 = vsel %vm24, -999.0, %v23
    %v26 = vlaneseq
    %v27 = vshrl.u32 %v26, 7
    %v28 = vlaneseq
    %v29 = vand.u32 %v28, 127
    %v30 = vmul.u32 %v27, 32
    %vm31 = vcmp.eq.s32.totalorder %v29, %v30
    %v32 = vsel %vm31, 1, 0
    %v33 = vcvt.s32.f32 %v32
    %vm34 = vcmask 31744
    %v36 = vsel %vm34, %v25, 0
    %vm38 = vcmask 1043456
    %v40 = vsel %vm38, %v33, 0
    %42 = vmatprep.subr.mxu0 0.0
    %v43 = vand.u32 %v40, 4294901760
    %44 = vmatpush1.msra.mxu0 %v43
    %45 = vmatprep.subr.mxu0 0.0
    %46 = vmatpush1.msra.mxu0 0.0
    %47 = vmatprep.subr.mxu0 0.0
    %48 = vmatpush1.msra.mxu0 0.0
    %49 = vmatprep.subr.mxu0 0.0
    %50 = vmatpush1.msra.mxu0 0.0
    %51 = vmatprep.subr.mxu0 0.0
    %52 = vmatpush1.msra.mxu0 0.0
    %53 = vmatprep.subr.mxu0 0.0
    %54 = vmatpush1.msra.mxu0 0.0
    %55 = vmatprep.subr.mxu0 0.0
    %56 = vmatpush1.msra.mxu0 0.0
    %57 = vmatprep.subr.mxu0 0.0
    %58 = vmatpush1.msra.mxu0 0.0
    %59 = vmatprep.subr.mxu0 0.0
    %60 = vmatpush1.msra.mxu0 0.0
    %61 = vmatprep.subr.mxu0 0.0
    %62 = vmatpush1.msra.mxu0 0.0
    %63 = vmatprep.subr.mxu0 0.0
    %64 = vmatpush1.msra.mxu0 0.0
    %65 = vmatprep.subr.mxu0 0.0
    %66 = vmatpush1.msra.mxu0 0.0
    %67 = vmatprep.subr.mxu0 0.0
    %68 = vmatpush1.msra.mxu0 0.0
    %69 = vmatprep.subr.mxu0 0.0
    %70 = vmatpush1.msra.mxu0 0.0
    %71 = vmatprep.subr.mxu0 0.0
    %72 = vmatpush1.msra.mxu0 0.0
    %73 = vmatprep.subr.mxu0 0.0
    %74 = vmatpush1.msra.mxu0 0.0
    %75 = vmatprep.subr.mxu0 0.0
    %76 = vmatpush1.msra.mxu0 0.0
    %77 = vmatprep.subr.mxu0 0.0
    %78 = vmatpush1.msra.mxu0 0.0
    %79 = vmatprep.subr.mxu0 0.0
    %80 = vmatpush1.msra.mxu0 0.0
    %81 = vmatprep.subr.mxu0 0.0
    %82 = vmatpush1.msra.mxu0 0.0
    %83 = vmatprep.subr.mxu0 0.0
    %84 = vmatpush1.msra.mxu0 0.0
    %85 = vmatprep.subr.mxu0 0.0
    %86 = vmatpush1.msra.mxu0 0.0
    %87 = vmatprep.subr.mxu0 0.0
    %88 = vmatpush1.msra.mxu0 0.0
    %89 = vmatprep.subr.mxu0 0.0
    %90 = vmatpush1.msra.mxu0 0.0
    %91 = vmatprep.subr.mxu0 0.0
    %92 = vmatpush1.msra.mxu0 0.0
    %93 = vmatprep.subr.mxu0 0.0
    %94 = vmatpush1.msra.mxu0 0.0
    %95 = vmatprep.subr.mxu0 0.0
    %96 = vmatpush1.msra.mxu0 0.0
    %97 = vmatprep.subr.mxu0 0.0
    %98 = vmatpush1.msra.mxu0 0.0
    %99 = vmatprep.subr.mxu0 0.0
    %100 = vmatpush1.msra.mxu0 0.0
    %101 = vmatprep.subr.mxu0 0.0
    %102 = vmatpush1.msra.mxu0 0.0
    %103 = vmatprep.subr.mxu0 0.0
    %104 = vmatpush1.msra.mxu0 0.0
    %105 = vmatprep.subr.mxu0 0.0
    %106 = vmatpush1.msra.mxu0 0.0
    %107 = vmatprep.mubr.f32.mxu0 0.0
    %v108 = vand.u32 %v36, 4294901760
    %v109 = vsub.f32 %v36, %v108
    %v110 = vand.u32 %v109, 4294901760
    %v111 = vsub.f32 %v109, %v110
    %v112 = vand.u32 %v111, 4294901760
    %113 = vmatmul.mubr.f32.gmra.mrb[0].mxu0 %v112
    %v114 = vpop.f32.mrb[0].mxu0
    %v115 = vadd.f32 0.0, %v114
    %v116 = vpop.f32.mrb[0].mxu0
    %117 = vdwg.mxu0
    %118 = vmatprep.subr.mxu0 0.0
    %v119 = vand.u32 %v40, 4294901760
    %v120 = vsub.f32 %v40, %v119
    %v121 = vand.u32 %v120, 4294901760
    %v122 = vsub.f32 %v120, %v121
    %v123 = vand.u32 %v122, 4294901760
    %124 = vmatpush1.msra.mxu0 %v123
    %125 = vmatprep.subr.mxu0 0.0
    %126 = vmatpush1.msra.mxu0 0.0
    %127 = vmatprep.subr.mxu0 0.0
    %128 = vmatpush1.msra.mxu0 0.0
    %129 = vmatprep.subr.mxu0 0.0
    %130 = vmatpush1.msra.mxu0 0.0
    %131 = vmatprep.subr.mxu0 0.0
    %132 = vmatpush1.msra.mxu0 0.0
    %133 = vmatprep.subr.mxu0 0.0
    %134 = vmatpush1.msra.mxu0 0.0
    %135 = vmatprep.subr.mxu0 0.0
    %136 = vmatpush1.msra.mxu0 0.0
    %137 = vmatprep.subr.mxu0 0.0
    %138 = vmatpush1.msra.mxu0 0.0
    %139 = vmatprep.subr.mxu0 0.0
    %140 = vmatpush1.msra.mxu0 0.0
    %141 = vmatprep.subr.mxu0 0.0
    %142 = vmatpush1.msra.mxu0 0.0
    %143 = vmatprep.subr.mxu0 0.0
    %144 = vmatpush1.msra.mxu0 0.0
    %145 = vmatprep.subr.mxu0 0.0
    %146 = vmatpush1.msra.mxu0 0.0
    %147 = vmatprep.subr.mxu0 0.0
    %148 = vmatpush1.msra.mxu0 0.0
    %149 = vmatprep.subr.mxu0 0.0
    %150 = vmatpush1.msra.mxu0 0.0
    %151 = vmatprep.subr.mxu0 0.0
    %152 = vmatpush1.msra.mxu0 0.0
    %153 = vmatprep.subr.mxu0 0.0
    %154 = vmatpush1.msra.mxu0 0.0
    %155 = vmatprep.subr.mxu0 0.0
    %156 = vmatpush1.msra.mxu0 0.0
    %157 = vmatprep.subr.mxu0 0.0
    %158 = vmatpush1.msra.mxu0 0.0
    %159 = vmatprep.subr.mxu0 0.0
    %160 = vmatpush1.msra.mxu0 0.0
    %161 = vmatprep.subr.mxu0 0.0
    %162 = vmatpush1.msra.mxu0 0.0
    %163 = vmatprep.subr.mxu0 0.0
    %164 = vmatpush1.msra.mxu0 0.0
    %165 = vmatprep.subr.mxu0 0.0
    %166 = vmatpush1.msra.mxu0 0.0
    %167 = vmatprep.subr.mxu0 0.0
    %168 = vmatpush1.msra.mxu0 0.0
    %169 = vmatprep.subr.mxu0 0.0
    %170 = vmatpush1.msra.mxu0 0.0
    %171 = vmatprep.subr.mxu0 0.0
    %172 = vmatpush1.msra.mxu0 0.0
    %173 = vmatprep.subr.mxu0 0.0
    %174 = vmatpush1.msra.mxu0 0.0
    %175 = vmatprep.subr.mxu0 0.0
    %176 = vmatpush1.msra.mxu0 0.0
    %177 = vmatprep.subr.mxu0 0.0
    %178 = vmatpush1.msra.mxu0 0.0
    %179 = vmatprep.subr.mxu0 0.0
    %180 = vmatpush1.msra.mxu0 0.0
    %181 = vmatprep.subr.mxu0 0.0
    %182 = vmatpush1.msra.mxu0 0.0
    %183 = vmatprep.subr.mxu0 0.0
    %184 = vmatpush1.msra.mxu0 0.0
    %185 = vmatprep.subr.mxu0 0.0
    %186 = vmatpush1.msra.mxu0 0.0
    %187 = vmatprep.mubr.f32.mxu0 0.0
    %v188 = vand.u32 %v36, 4294901760
    %189 = vmatmul.mubr.f32.gmra.mrb[0].mxu0 %v188
    %v190 = vpop.f32.mrb[0].mxu0
    %v191 = vadd.f32 %v115, %v190
    %v192 = vpop.f32.mrb[0].mxu0
    %193 = vdwg.mxu0
    %194 = vmatprep.subr.mxu0 0.0
    %v195 = vand.u32 %v40, 4294901760
    %v196 = vsub.f32 %v40, %v195
    %197 = vmatpush1.msra.mxu0 %v196
    %198 = vmatprep.subr.mxu0 0.0
    %199 = vmatpush1.msra.mxu0 0.0
    %200 = vmatprep.subr.mxu0 0.0
    %201 = vmatpush1.msra.mxu0 0.0
    %202 = vmatprep.subr.mxu0 0.0
    %203 = vmatpush1.msra.mxu0 0.0
    %204 = vmatprep.subr.mxu0 0.0
    %205 = vmatpush1.msra.mxu0 0.0
    %206 = vmatprep.subr.mxu0 0.0
    %207 = vmatpush1.msra.mxu0 0.0
    %208 = vmatprep.subr.mxu0 0.0
    %209 = vmatpush1.msra.mxu0 0.0
    %210 = vmatprep.subr.mxu0 0.0
    %211 = vmatpush1.msra.mxu0 0.0
    %212 = vmatprep.subr.mxu0 0.0
    %213 = vmatpush1.msra.mxu0 0.0
    %214 = vmatprep.subr.mxu0 0.0
    %215 = vmatpush1.msra.mxu0 0.0
    %216 = vmatprep.subr.mxu0 0.0
    %217 = vmatpush1.msra.mxu0 0.0
    %218 = vmatprep.subr.mxu0 0.0
    %219 = vmatpush1.msra.mxu0 0.0
    %220 = vmatprep.subr.mxu0 0.0
    %221 = vmatpush1.msra.mxu0 0.0
    %222 = vmatprep.subr.mxu0 0.0
    %223 = vmatpush1.msra.mxu0 0.0
    %224 = vmatprep.subr.mxu0 0.0
    %225 = vmatpush1.msra.mxu0 0.0
    %226 = vmatprep.subr.mxu0 0.0
    %227 = vmatpush1.msra.mxu0 0.0
    %228 = vmatprep.subr.mxu0 0.0
    %229 = vmatpush1.msra.mxu0 0.0
    %230 = vmatprep.subr.mxu0 0.0
    %231 = vmatpush1.msra.mxu0 0.0
    %232 = vmatprep.subr.mxu0 0.0
    %233 = vmatpush1.msra.mxu0 0.0
    %234 = vmatprep.subr.mxu0 0.0
    %235 = vmatpush1.msra.mxu0 0.0
    %236 = vmatprep.subr.mxu0 0.0
    %237 = vmatpush1.msra.mxu0 0.0
    %238 = vmatprep.subr.mxu0 0.0
    %239 = vmatpush1.msra.mxu0 0.0
    %240 = vmatprep.subr.mxu0 0.0
    %241 = vmatpush1.msra.mxu0 0.0
    %242 = vmatprep.subr.mxu0 0.0
    %243 = vmatpush1.msra.mxu0 0.0
    %244 = vmatprep.subr.mxu0 0.0
    %245 = vmatpush1.msra.mxu0 0.0
    %246 = vmatprep.subr.mxu0 0.0
    %247 = vmatpush1.msra.mxu0 0.0
    %248 = vmatprep.subr.mxu0 0.0
    %249 = vmatpush1.msra.mxu0 0.0
    %250 = vmatprep.subr.mxu0 0.0
    %251 = vmatpush1.msra.mxu0 0.0
    %252 = vmatprep.subr.mxu0 0.0
    %253 = vmatpush1.msra.mxu0 0.0
    %254 = vmatprep.subr.mxu0 0.0
    %255 = vmatpush1.msra.mxu0 0.0
    %256 = vmatprep.subr.mxu0 0.0
    %257 = vmatpush1.msra.mxu0 0.0
    %258 = vmatprep.subr.mxu0 0.0
    %259 = vmatpush1.msra.mxu0 0.0
    %260 = vmatprep.mubr.f32.mxu0 0.0
    %v261 = vand.u32 %v36, 4294901760
    %v262 = vsub.f32 %v36, %v261
    %263 = vmatmul.mubr.f32.gmra.mrb[0].mxu0 %v262
    %v264 = vpop.f32.mrb[0].mxu0
    %v265 = vadd.f32 %v191, %v264
    %v266 = vpop.f32.mrb[0].mxu0
    %267 = vdwg.mxu0
    %268 = vmatprep.subr.mxu0 0.0
    %v269 = vand.u32 %v40, 4294901760
    %270 = vmatpush1.msra.mxu0 %v269
    %271 = vmatprep.subr.mxu0 0.0
    %272 = vmatpush1.msra.mxu0 0.0
    %273 = vmatprep.subr.mxu0 0.0
    %274 = vmatpush1.msra.mxu0 0.0
    %275 = vmatprep.subr.mxu0 0.0
    %276 = vmatpush1.msra.mxu0 0.0
    %277 = vmatprep.subr.mxu0 0.0
    %278 = vmatpush1.msra.mxu0 0.0
    %279 = vmatprep.subr.mxu0 0.0
    %280 = vmatpush1.msra.mxu0 0.0
    %281 = vmatprep.subr.mxu0 0.0
    %282 = vmatpush1.msra.mxu0 0.0
    %283 = vmatprep.subr.mxu0 0.0
    %284 = vmatpush1.msra.mxu0 0.0
    %285 = vmatprep.subr.mxu0 0.0
    %286 = vmatpush1.msra.mxu0 0.0
    %287 = vmatprep.subr.mxu0 0.0
    %288 = vmatpush1.msra.mxu0 0.0
    %289 = vmatprep.subr.mxu0 0.0
    %290 = vmatpush1.msra.mxu0 0.0
    %291 = vmatprep.subr.mxu0 0.0
    %292 = vmatpush1.msra.mxu0 0.0
    %293 = vmatprep.subr.mxu0 0.0
    %294 = vmatpush1.msra.mxu0 0.0
    %295 = vmatprep.subr.mxu0 0.0
    %296 = vmatpush1.msra.mxu0 0.0
    %297 = vmatprep.subr.mxu0 0.0
    %298 = vmatpush1.msra.mxu0 0.0
    %299 = vmatprep.subr.mxu0 0.0
    %300 = vmatpush1.msra.mxu0 0.0
    %301 = vmatprep.subr.mxu0 0.0
    %302 = vmatpush1.msra.mxu0 0.0
    %303 = vmatprep.subr.mxu0 0.0
    %304 = vmatpush1.msra.mxu0 0.0
    %305 = vmatprep.subr.mxu0 0.0
    %306 = vmatpush1.msra.mxu0 0.0
    %307 = vmatprep.subr.mxu0 0.0
    %308 = vmatpush1.msra.mxu0 0.0
    %309 = vmatprep.subr.mxu0 0.0
    %310 = vmatpush1.msra.mxu0 0.0
    %311 = vmatprep.subr.mxu0 0.0
    %312 = vmatpush1.msra.mxu0 0.0
    %313 = vmatprep.subr.mxu0 0.0
    %314 = vmatpush1.msra.mxu0 0.0
    %315 = vmatprep.subr.mxu0 0.0
    %316 = vmatpush1.msra.mxu0 0.0
    %317 = vmatprep.subr.mxu0 0.0
    %318 = vmatpush1.msra.mxu0 0.0
    %319 = vmatprep.subr.mxu0 0.0
    %320 = vmatpush1.msra.mxu0 0.0
    %321 = vmatprep.subr.mxu0 0.0
    %322 = vmatpush1.msra.mxu0 0.0
    %323 = vmatprep.subr.mxu0 0.0
    %324 = vmatpush1.msra.mxu0 0.0
    %325 = vmatprep.subr.mxu0 0.0
    %326 = vmatpush1.msra.mxu0 0.0
    %327 = vmatprep.subr.mxu0 0.0
    %328 = vmatpush1.msra.mxu0 0.0
    %329 = vmatprep.subr.mxu0 0.0
    %330 = vmatpush1.msra.mxu0 0.0
    %331 = vmatprep.subr.mxu0 0.0
    %332 = vmatpush1.msra.mxu0 0.0
    %333 = vmatprep.mubr.f32.mxu0 0.0
    %v334 = vand.u32 %v36, 4294901760
    %v335 = vsub.f32 %v36, %v334
    %v336 = vand.u32 %v335, 4294901760
    %337 = vmatmul.mubr.f32.gmra.mrb[0].mxu0 %v336
    %v338 = vpop.f32.mrb[0].mxu0
    %v339 = vadd.f32 %v265, %v338
    %v340 = vpop.f32.mrb[0].mxu0
    %341 = vdwg.mxu0
    %342 = vmatprep.subr.mxu0 0.0
    %v343 = vand.u32 %v40, 4294901760
    %v344 = vsub.f32 %v40, %v343
    %v345 = vand.u32 %v344, 4294901760
    %346 = vmatpush1.msra.mxu0 %v345
    %347 = vmatprep.subr.mxu0 0.0
    %348 = vmatpush1.msra.mxu0 0.0
    %349 = vmatprep.subr.mxu0 0.0
    %350 = vmatpush1.msra.mxu0 0.0
    %351 = vmatprep.subr.mxu0 0.0
    %352 = vmatpush1.msra.mxu0 0.0
    %353 = vmatprep.subr.mxu0 0.0
    %354 = vmatpush1.msra.mxu0 0.0
    %355 = vmatprep.subr.mxu0 0.0
    %356 = vmatpush1.msra.mxu0 0.0
    %357 = vmatprep.subr.mxu0 0.0
    %358 = vmatpush1.msra.mxu0 0.0
    %359 = vmatprep.subr.mxu0 0.0
    %360 = vmatpush1.msra.mxu0 0.0
    %361 = vmatprep.subr.mxu0 0.0
    %362 = vmatpush1.msra.mxu0 0.0
    %363 = vmatprep.subr.mxu0 0.0
    %364 = vmatpush1.msra.mxu0 0.0
    %365 = vmatprep.subr.mxu0 0.0
    %366 = vmatpush1.msra.mxu0 0.0
    %367 = vmatprep.subr.mxu0 0.0
    %368 = vmatpush1.msra.mxu0 0.0
    %369 = vmatprep.subr.mxu0 0.0
    %370 = vmatpush1.msra.mxu0 0.0
    %371 = vmatprep.subr.mxu0 0.0
    %372 = vmatpush1.msra.mxu0 0.0
    %373 = vmatprep.subr.mxu0 0.0
    %374 = vmatpush1.msra.mxu0 0.0
    %375 = vmatprep.subr.mxu0 0.0
    %376 = vmatpush1.msra.mxu0 0.0
    %377 = vmatprep.subr.mxu0 0.0
    %378 = vmatpush1.msra.mxu0 0.0
    %379 = vmatprep.subr.mxu0 0.0
    %380 = vmatpush1.msra.mxu0 0.0
    %381 = vmatprep.subr.mxu0 0.0
    %382 = vmatpush1.msra.mxu0 0.0
    %383 = vmatprep.subr.mxu0 0.0
    %384 = vmatpush1.msra.mxu0 0.0
    %385 = vmatprep.subr.mxu0 0.0
    %386 = vmatpush1.msra.mxu0 0.0
    %387 = vmatprep.subr.mxu0 0.0
    %388 = vmatpush1.msra.mxu0 0.0
    %389 = vmatprep.subr.mxu0 0.0
    %390 = vmatpush1.msra.mxu0 0.0
    %391 = vmatprep.subr.mxu0 0.0
    %392 = vmatpush1.msra.mxu0 0.0
    %393 = vmatprep.subr.mxu0 0.0
    %394 = vmatpush1.msra.mxu0 0.0
    %395 = vmatprep.subr.mxu0 0.0
    %396 = vmatpush1.msra.mxu0 0.0
    %397 = vmatprep.subr.mxu0 0.0
    %398 = vmatpush1.msra.mxu0 0.0
    %399 = vmatprep.subr.mxu0 0.0
    %400 = vmatpush1.msra.mxu0 0.0
    %401 = vmatprep.subr.mxu0 0.0
    %402 = vmatpush1.msra.mxu0 0.0
    %403 = vmatprep.subr.mxu0 0.0
    %404 = vmatpush1.msra.mxu0 0.0
    %405 = vmatprep.subr.mxu0 0.0
    %406 = vmatpush1.msra.mxu0 0.0
    %407 = vmatprep.subr.mxu0 0.0
    %408 = vmatpush1.msra.mxu0 0.0
    %409 = vmatprep.mubr.f32.mxu0 0.0
    %v410 = vand.u32 %v36, 4294901760
    %411 = vmatmul.mubr.f32.gmra.mrb[0].mxu0 %v410
    %v412 = vpop.f32.mrb[0].mxu0
    %v413 = vadd.f32 %v339, %v412
    %v414 = vpop.f32.mrb[0].mxu0
    %415 = vdwg.mxu0
    %416 = vmatprep.subr.mxu0 0.0
    %v417 = vand.u32 %v40, 4294901760
    %418 = vmatpush1.msra.mxu0 %v417
    %419 = vmatprep.subr.mxu0 0.0
    %420 = vmatpush1.msra.mxu0 0.0
    %421 = vmatprep.subr.mxu0 0.0
    %422 = vmatpush1.msra.mxu0 0.0
    %423 = vmatprep.subr.mxu0 0.0
    %424 = vmatpush1.msra.mxu0 0.0
    %425 = vmatprep.subr.mxu0 0.0
    %426 = vmatpush1.msra.mxu0 0.0
    %427 = vmatprep.subr.mxu0 0.0
    %428 = vmatpush1.msra.mxu0 0.0
    %429 = vmatprep.subr.mxu0 0.0
    %430 = vmatpush1.msra.mxu0 0.0
    %431 = vmatprep.subr.mxu0 0.0
    %432 = vmatpush1.msra.mxu0 0.0
    %433 = vmatprep.subr.mxu0 0.0
    %434 = vmatpush1.msra.mxu0 0.0
    %435 = vmatprep.subr.mxu0 0.0
    %436 = vmatpush1.msra.mxu0 0.0
    %437 = vmatprep.subr.mxu0 0.0
    %438 = vmatpush1.msra.mxu0 0.0
    %439 = vmatprep.subr.mxu0 0.0
    %440 = vmatpush1.msra.mxu0 0.0
    %441 = vmatprep.subr.mxu0 0.0
    %442 = vmatpush1.msra.mxu0 0.0
    %443 = vmatprep.subr.mxu0 0.0
    %444 = vmatpush1.msra.mxu0 0.0
    %445 = vmatprep.subr.mxu0 0.0
    %446 = vmatpush1.msra.mxu0 0.0
    %447 = vmatprep.subr.mxu0 0.0
    %448 = vmatpush1.msra.mxu0 0.0
    %449 = vmatprep.subr.mxu0 0.0
    %450 = vmatpush1.msra.mxu0 0.0
    %451 = vmatprep.subr.mxu0 0.0
    %452 = vmatpush1.msra.mxu0 0.0
    %453 = vmatprep.subr.mxu0 0.0
    %454 = vmatpush1.msra.mxu0 0.0
    %455 = vmatprep.subr.mxu0 0.0
    %456 = vmatpush1.msra.mxu0 0.0
    %457 = vmatprep.subr.mxu0 0.0
    %458 = vmatpush1.msra.mxu0 0.0
    %459 = vmatprep.subr.mxu0 0.0
    %460 = vmatpush1.msra.mxu0 0.0
    %461 = vmatprep.subr.mxu0 0.0
    %462 = vmatpush1.msra.mxu0 0.0
    %463 = vmatprep.subr.mxu0 0.0
    %464 = vmatpush1.msra.mxu0 0.0
    %465 = vmatprep.subr.mxu0 0.0
    %466 = vmatpush1.msra.mxu0 0.0
    %467 = vmatprep.subr.mxu0 0.0
    %468 = vmatpush1.msra.mxu0 0.0
    %469 = vmatprep.subr.mxu0 0.0
    %470 = vmatpush1.msra.mxu0 0.0
    %471 = vmatprep.subr.mxu0 0.0
    %472 = vmatpush1.msra.mxu0 0.0
    %473 = vmatprep.subr.mxu0 0.0
    %474 = vmatpush1.msra.mxu0 0.0
    %475 = vmatprep.subr.mxu0 0.0
    %476 = vmatpush1.msra.mxu0 0.0
    %477 = vmatprep.subr.mxu0 0.0
    %478 = vmatpush1.msra.mxu0 0.0
    %479 = vmatprep.subr.mxu0 0.0
    %480 = vmatpush1.msra.mxu0 0.0
    %481 = vmatprep.mubr.f32.mxu0 0.0
    %v482 = vand.u32 %v36, 4294901760
    %483 = vmatmul.mubr.f32.gmra.mrb[0].mxu0 %v482
    %v484 = vpop.f32.mrb[0].mxu0
    %v485 = vadd.f32 %v413, %v484
    %v486 = vpop.f32.mrb[0].mxu0
    %487 = vdwg.mxu0
    %488 = vst [vmem:[#allocation5] sm:$0xff] %v485
    // Predicated region
    $region10: #{tpu_custom_call.1} parent=1 // pred_check
      _
    $region11: #{tpu_custom_call.1} parent=1 // pred_check_branch
      %490 = sbr.rel (0) target = $region13
    $region12: #{tpu_custom_call.1} parent=1 // pred_region
      %s492 = ssub.s32 128, 64
      %493 = vsyncadd [#allocation4], %s492
      %s494 = sshll.u32 [#allocation5], 4
      %s495 = int_to_ptr.vmem [resolvable:$true] %s494
      %500 = dma.vmem_to_hbm [thread:$0]  %s495, 64, %s1, [#allocation4], 64, 64, 4
    $region13: #{tpu_custom_call.1} parent=1 // pred_fallthru
      _
    // Predicated region
    $region14: #{tpu_custom_call.1} parent=1 // pred_check
      _
    $region15: #{tpu_custom_call.1} parent=1 // pred_check_branch
      %502 = sbr.rel (0) target = $region17
    $region16: #{tpu_custom_call.1} parent=1 // pred_region
      %503 = dma.done [#allocation4], 128
    $region17: #{tpu_custom_call.1} parent=1 // pred_fallthru
      _
    %504 = vsyncpa [#allocation3], 1
    %505 = vsyncpa [#allocation4], 1

</llo_original>
